<compile_context>
chip_gen: v5e
topology: v5e:2x2
jax: 0.10.0
libtpu: 0.0.40
codegen_flags: <defaults>
</compile_context>

<pallas_src>
import jax
import jax.numpy as jnp
from jax.experimental import pallas as pl
from jax.experimental.pallas import tpu as pltpu

_MIB = 1 << 20
_LANE_CANDIDATES = (4096, 2048, 1024, 512, 256, 128)   # lane-dense column widths
_MIN_STEPS = 4            # >= 4 grid steps so prefetch/writeback overlap engages
_RAGGED_MIN_BYTES = 32 * _MIB   # only accept a masked partial tail on huge arrays


def _add_kernel(x_ref, y_ref, o_ref):
    # Pure VPU elementwise add on the current VMEM tile.
    o_ref[...] = x_ref[...] + y_ref[...]


def _chip_profile():
    """Trace-time, generation-aware block / VMEM / dispatch budget."""
    kind = ""
    try:
        kind = jax.devices()[0].device_kind.lower()
    except Exception:
        pass
    vmem_phys = None
    try:
        vmem_phys = int(getattr(pltpu.get_tpu_info(), "vmem_capacity_bytes", 0)) or None
    except Exception:
        pass

    is_v7x = ("7" in kind) or (vmem_phys is not None and vmem_phys <= 80 * _MIB)
    if is_v7x:
        # 64 MiB physical VMEM per TC, 32 MiB default scope -> raise to 48 MiB.
        # 2 inputs + 1 output, each double-buffered = 6 x block live at once.
        prof = dict(block_bytes=7 * _MIB, small_bytes=2 * _MIB,
                    vmem_limit_bytes=48 * _MIB, prefer_even_steps=True)
    elif "v6" in kind:
        # 128 MiB physical, 32 MiB default scope -> raise to 64 MiB, 8 MiB blocks.
        prof = dict(block_bytes=8 * _MIB, small_bytes=1 * _MIB,
                    vmem_limit_bytes=64 * _MIB, prefer_even_steps=False)
    elif "v5" in kind:
        # 16 MiB default scoped VMEM: 2 MiB blocks (12 MiB buffered), no raise.
        prof = dict(block_bytes=2 * _MIB, small_bytes=512 * 1024,
                    vmem_limit_bytes=None, prefer_even_steps=False)
    else:
        # Unknown generation: conservative v5e-like budget.
        prof = dict(block_bytes=2 * _MIB, small_bytes=512 * 1024,
                    vmem_limit_bytes=None, prefer_even_steps=False)

    if vmem_phys is not None and prof["vmem_limit_bytes"] is not None:
        prof["vmem_limit_bytes"] = min(prof["vmem_limit_bytes"], (vmem_phys * 3) // 4)
        prof["block_bytes"] = min(prof["block_bytes"],
                                  max(_MIB, (prof["vmem_limit_bytes"] - 4 * _MIB) // 6))
    return prof


def _sublane_multiple(dtype):
    itemsize = jnp.dtype(dtype).itemsize
    if itemsize >= 4:
        return 8
    if itemsize == 2:
        return 16
    return 32


def _divisors(n):
    small, large = [], []
    i = 1
    while i * i <= n:
        if n % i == 0:
            small.append(i)
            if i != n // i:
                large.append(n // i)
        i += 1
    return small + large[::-1]


def _pick_row_tile(rows, lanes, itemsize, sub, block_bytes, min_steps, prefer_even):
    """Largest row tile that (a) divides `rows` exactly, (b) is a multiple of the
    sublane quantum (or equals the full dim), (c) fits the per-block VMEM budget
    and (d) yields >= min_steps grid steps. Prefers an even step count (v7x
    megacore). Returns None if no such tile exists (no ragged tail here)."""
    max_rows = max(1, block_bytes // (lanes * itemsize))
    cands = [d for d in _divisors(rows)
             if d <= max_rows and (d % sub == 0 or d == rows)]
    cands.sort(reverse=True)
    best_any = None
    best_even = None
    for tr in cands:
        steps = rows // tr
        if steps < min_steps:
            continue
        if best_any is None:
            best_any = tr
        if best_even is None and steps % 2 == 0:
            best_even = tr
        if best_any is not None and (best_even is not None or not prefer_even):
            break
    if prefer_even and best_even is not None:
        return best_even
    return best_any


def _choose_tiling(n, itemsize, sub, block_bytes, min_steps, prefer_even):
    # Pass 1: only lane widths whose row count keeps vregs sublane-dense
    # (rows >= sub). Pass 2: anything that factors (tiny forced inputs).
    for require_dense in (True, False):
        for lanes in _LANE_CANDIDATES:
            if n % lanes:
                continue
            rows = n // lanes
            if require_dense and rows < sub:
                continue
            tr = _pick_row_tile(rows, lanes, itemsize, sub, block_bytes,
                                min_steps, prefer_even)
            if tr is not None:
                return lanes, rows, tr
    return None


def _ragged_tiling(n, itemsize, sub, block_bytes, min_steps):
    """Last-resort tiling with a masked partial last block (huge arrays only)."""
    for lanes in _LANE_CANDIDATES:
        if n % lanes:
            continue
        rows = n // lanes
        if rows < sub:
            continue
        max_rows = max(sub, (block_bytes // (lanes * itemsize)) // sub * sub)
        tr = min(max_rows, max(sub, (rows // min_steps) // sub * sub))
        return lanes, rows, tr
    return None


def pallas_add(x, y, *, force_pallas=False, donate_x=False):
    """Elementwise add of two equally-shaped, same-dtype arrays (Add.forward)."""
    assert x.shape == y.shape, "Add kernel requires identical shapes (no broadcasting)"
    assert x.dtype == y.dtype, "Add kernel requires identical dtypes"

    n = x.size
    if n == 0:
        return x + y
    itemsize = jnp.dtype(x.dtype).itemsize
    prof = _chip_profile()

    if not force_pallas and n * itemsize < prof["small_bytes"]:
        # Kernel launch + DMA setup dwarfs the add itself at these sizes.
        return x + y
    if n % 128 != 0:
        # A lane-dense factoring would need a pad/slice copy costing more HBM
        # traffic than the add; let XLA handle it.
        return x + y

    sub = _sublane_multiple(x.dtype)
    min_steps = 1 if force_pallas else _MIN_STEPS
    tiling = _choose_tiling(n, itemsize, sub, prof["block_bytes"], min_steps,
                            prof["prefer_even_steps"])
    if tiling is None and (force_pallas or n * itemsize >= _RAGGED_MIN_BYTES):
        tiling = _ragged_tiling(n, itemsize, sub, prof["block_bytes"], min_steps)
    if tiling is None:
        # 1-2 step regime or no clean factoring: XLA's fused add wins.
        return x + y

    lanes, rows, tr = tiling
    grid = (pl.cdiv(rows, tr),)

    x2 = x.reshape(rows, lanes)
    y2 = y.reshape(rows, lanes)

    cp_kwargs = dict(dimension_semantics=("parallel",))
    if prof["vmem_limit_bytes"] is not None:
        cp_kwargs["vmem_limit_bytes"] = int(prof["vmem_limit_bytes"])

    out2 = pl.pallas_call(
        _add_kernel,
        out_shape=jax.ShapeDtypeStruct((rows, lanes), x.dtype),
        grid_spec=pltpu.PrefetchScalarGridSpec(
            num_scalar_prefetch=0,
            grid=grid,
            in_specs=[
                pl.BlockSpec((tr, lanes), lambda i: (i, 0)),
                pl.BlockSpec((tr, lanes), lambda i: (i, 0)),
            ],
            out_specs=pl.BlockSpec((tr, lanes), lambda i: (i, 0)),
        ),
        compiler_params=pltpu.CompilerParams(**cp_kwargs),
        cost_estimate=pl.CostEstimate(
            flops=n, transcendentals=0, bytes_accessed=3 * n * itemsize
        ),
        # Allocation saver only (needs donated, contiguous x); not a bandwidth win.
        input_output_aliases=({0: 0} if donate_x else {}),
    )(x2, y2)

    return out2.reshape(x.shape)


if __name__ == "__main__":
    key = jax.random.PRNGKey(0)
    kx, ky = jax.random.split(key)

    # Small NCHW shape consistent with the module's forward(x, y).
    x = jax.random.normal(kx, (2, 4, 16, 16), dtype=jnp.float32)
    y = jax.random.normal(ky, (2, 4, 16, 16), dtype=jnp.float32)
    out = pallas_add(x, y, force_pallas=True)     # force the Pallas path for the tiny test
    jax.block_until_ready(out)
    ref = x + y
    assert out.shape == ref.shape and out.dtype == ref.dtype
    assert jnp.allclose(out, ref, atol=1e-6, rtol=1e-6), "mismatch vs reference add (f32)"

    # Larger f32 case: exercises the pipelined multi-block path (>= 4 grid steps).
    kx2, ky2 = jax.random.split(jax.random.PRNGKey(1))
    xb = jax.random.normal(kx2, (8, 64, 64, 64), dtype=jnp.float32)
    yb = jax.random.normal(ky2, (8, 64, 64, 64), dtype=jnp.float32)
    outb = pallas_add(xb, yb)
    jax.block_until_ready(outb)
    assert jnp.allclose(outb, xb + yb, atol=1e-6, rtol=1e-6), "mismatch vs reference add (big f32)"

    # bf16 case: exercises the dtype-aware (16-row) sublane rounding.
    kx3, ky3 = jax.random.split(jax.random.PRNGKey(2))
    xh = jax.random.normal(kx3, (4, 32, 32, 64), dtype=jnp.bfloat16)
    yh = jax.random.normal(ky3, (4, 32, 32, 64), dtype=jnp.bfloat16)
    outh = pallas_add(xh, yh, force_pallas=True)
    jax.block_until_ready(outh)
    assert jnp.allclose(outh.astype(jnp.float32), (xh + yh).astype(jnp.float32),
                        atol=1e-2, rtol=1e-2), "mismatch vs reference add (bf16)"

    print("KERNEL_OK")
</pallas_src>

<mosaic_0001>
module attributes {stable_mosaic.version = 11 : i64} {
  func.func @_add_kernel(%arg0: i32, %arg1: memref<8x256xf32, #tpu.memory_space<vmem>>, %arg2: memref<8x256xf32, #tpu.memory_space<vmem>>, %arg3: memref<8x256xf32, #tpu.memory_space<vmem>>) attributes {dimension_semantics = [#tpu.dimension_semantics<parallel>], iteration_bounds = array<i64: 1>, scalar_prefetch = 0 : i64, scratch_operands = 0 : i64, tpu.core_type = #tpu.core_type<tc>, window_params = [{transform_indices = @transform_0, window_bounds = array<i64: 8, 256>}, {transform_indices = @transform_1, window_bounds = array<i64: 8, 256>}, {transform_indices = @transform_2, window_bounds = array<i64: 8, 256>}]} {
    %c0 = arith.constant 0 : index
    %c0_0 = arith.constant 0 : index
    %0 = vector.load %arg1[%c0, %c0_0] : memref<8x256xf32, #tpu.memory_space<vmem>>, vector<8x256xf32>
    %c0_1 = arith.constant 0 : index
    %c0_2 = arith.constant 0 : index
    %1 = vector.load %arg2[%c0_1, %c0_2] : memref<8x256xf32, #tpu.memory_space<vmem>>, vector<8x256xf32>
    %2 = arith.addf %0, %1 : vector<8x256xf32>
    %c0_3 = arith.constant 0 : index
    %c0_4 = arith.constant 0 : index
    %3 = vector.load %arg3[%c0_3, %c0_4] : memref<8x256xf32, #tpu.memory_space<vmem>>, vector<8x256xf32>
    tpu.vector_store %arg3[%c0_3, %c0_4], %2 {strides = array<i32>} : memref<8x256xf32, #tpu.memory_space<vmem>>, vector<8x256xf32>,
    return
  }
  func.func @transform_0(%arg0: i32) -> (i32, i32) {
    %c0_i32 = arith.constant 0 : i32
    %c0_i32_0 = arith.constant 0 : i32
    return %arg0, %c0_i32 : i32, i32
  }
  func.func @transform_1(%arg0: i32) -> (i32, i32) {
    %c0_i32 = arith.constant 0 : i32
    %c0_i32_0 = arith.constant 0 : i32
    return %arg0, %c0_i32 : i32, i32
  }
  func.func @transform_2(%arg0: i32) -> (i32, i32) {
    %c0_i32 = arith.constant 0 : i32
    %c0_i32_0 = arith.constant 0 : i32
    return %arg0, %c0_i32 : i32, i32
  }
}

</mosaic_0001>

<llo_original>
// kernel: tpu_custom_call.1
$region0: #{tpu_custom_call.1}
  #allocation0 [shape = 'u32[]', space=smem, size = 0x4, offset = 0x4, fixed_abs, tag = 'smem constant byte address 0x4 - core index']
  #allocation1 [shape = 'u32[72,128]{1,0:T(1,128)}', space=vmem, size = 0x9000, scoped, tag = 'internal scratch']
  %s0 = inlined_call_operand.hbm [shape: f32[8,256], index: 0, kind: input, shape index: {}]
  %s1 = inlined_call_operand.hbm [shape: f32[8,256], index: 1, kind: input, shape index: {}]
  %s2 = inlined_call_operand.hbm [shape: f32[8,256], index: 2, kind: output, shape index: {}]
  %s3 = sld [smem:[#allocation0]]
  $region26: #{tpu_custom_call.1} parent=0
    _
  %s5 = ssub.s32 1, %s3
  %s6 = scalar_select 0, %s5, %s3
  $region1: #{tpu_custom_call.1} parent=0
    #allocation2 [shape = 'u8[8192]{0}', space=vmem, size = 0x2000, scoped, tag = 'input window, operand 0, single buffered']
    #allocation3 [shape = 's32[1]{0}', space=sflag, size = 0x4, scoped, tag = 'scoped memory for tpu_custom_call.1']
    #allocation4 [shape = 's32[1]{0}', space=sflag, size = 0x4, scoped, tag = 'scoped memory for tpu_custom_call.1']
    #allocation5 [shape = 'u8[8192]{0}', space=vmem, size = 0x2000, scoped, tag = 'input window, operand 1, single buffered']
    #allocation6 [shape = 's32[1]{0}', space=sflag, size = 0x4, scoped, tag = 'scoped memory for tpu_custom_call.1']
    #allocation7 [shape = 'u8[8192]{0}', space=vmem, size = 0x2000, scoped, tag = 'output window, operand 0, single buffered']
    %7 = vsyncpa [#allocation3], 0
    %8 = vsyncpa [#allocation6], 0
    %9 = vsyncpa [#allocation4], 0
    // Predicated region
    $region2: #{tpu_custom_call.1} parent=1 // pred_check
      _
    $region3: #{tpu_custom_call.1} parent=1 // pred_check_branch
      %11 = sbr.rel (0) target = $region5
    $region4: #{tpu_custom_call.1} parent=1 // pred_region
      %13 = vsyncadd [#allocation3], 0
      %s15 = sshll.u32 %s0, 4
      %s16 = int_to_ptr.hbm [resolvable:$true] %s15
      %s17 = sshll.u32 [#allocation2], 4
      %s18 = int_to_ptr.vmem [resolvable:$true] %s17
      %20 = dma.hbm_to_vmem [thread:$0]  %s16, 256, %s18, [#allocation3]
    $region5: #{tpu_custom_call.1} parent=1 // pred_fallthru
      _
    // Predicated region
    $region6: #{tpu_custom_call.1} parent=1 // pred_check
      _
    $region7: #{tpu_custom_call.1} parent=1 // pred_check_branch
      %22 = sbr.rel (0) target = $region9
    $region8: #{tpu_custom_call.1} parent=1 // pred_region
      %24 = vsyncadd [#allocation6], 0
      %s26 = sshll.u32 %s1, 4
      %s27 = int_to_ptr.hbm [resolvable:$true] %s26
      %s28 = sshll.u32 [#allocation5], 4
      %s29 = int_to_ptr.vmem [resolvable:$true] %s28
      %31 = dma.hbm_to_vmem [thread:$0]  %s27, 256, %s29, [#allocation6]
    $region9: #{tpu_custom_call.1} parent=1 // pred_fallthru
      _
    // Predicated region
    $region10: #{tpu_custom_call.1} parent=1 // pred_check
      _
    $region11: #{tpu_custom_call.1} parent=1 // pred_check_branch
      %33 = sbr.rel (0) target = $region13
    $region12: #{tpu_custom_call.1} parent=1 // pred_region
      %35 = dma.done [#allocation3], 256
    $region13: #{tpu_custom_call.1} parent=1 // pred_fallthru
      _
    // Predicated region
    $region14: #{tpu_custom_call.1} parent=1 // pred_check
      _
    $region15: #{tpu_custom_call.1} parent=1 // pred_check_branch
      %37 = sbr.rel (0) target = $region17
    $region16: #{tpu_custom_call.1} parent=1 // pred_region
      %39 = dma.done [#allocation6], 256
    $region17: #{tpu_custom_call.1} parent=1 // pred_fallthru
      _
    %v40 = vld [vmem:[#allocation2] sm:$0xff]
    %v41 = vld [vmem:[#allocation2 + $0x8] sm:$0xff]
    %v42 = vld [vmem:[#allocation5] sm:$0xff]
    %v43 = vld [vmem:[#allocation5 + $0x8] sm:$0xff]
    %v44 = vadd.f32 %v40, %v42
    %v45 = vadd.f32 %v41, %v43
    %46 = vst [vmem:[#allocation7] sm:$0xff] %v44
    %47 = vst [vmem:[#allocation7 + $0x8] sm:$0xff] %v45
    // Predicated region
    $region18: #{tpu_custom_call.1} parent=1 // pred_check
      _
    $region19: #{tpu_custom_call.1} parent=1 // pred_check_branch
      %49 = sbr.rel (0) target = $region21
    $region20: #{tpu_custom_call.1} parent=1 // pred_region
      %51 = vsyncadd [#allocation4], 0
      %s53 = sshll.u32 [#allocation7], 4
      %s54 = int_to_ptr.vmem [resolvable:$true] %s53
      %s55 = sshll.u32 %s2, 4
      %s56 = int_to_ptr.hbm [resolvable:$true] %s55
      %58 = dma.vmem_to_hbm [thread:$0]  %s54, 256, %s56, [#allocation4]
    $region21: #{tpu_custom_call.1} parent=1 // pred_fallthru
      _
    // Predicated region
    $region22: #{tpu_custom_call.1} parent=1 // pred_check
      _
    $region23: #{tpu_custom_call.1} parent=1 // pred_check_branch
      %60 = sbr.rel (0) target = $region25
    $region24: #{tpu_custom_call.1} parent=1 // pred_region
      %62 = dma.done [#allocation4], 256
    $region25: #{tpu_custom_call.1} parent=1 // pred_fallthru
      _
    %63 = vsyncpa [#allocation3], 1
    %64 = vsyncpa [#allocation6], 1
    %65 = vsyncpa [#allocation4], 1

</llo_original>
